<compile_context>
chip_gen: v5e
topology: v5e:2x2
jax: 0.10.0
libtpu: 0.0.40
codegen_flags: <defaults>
</compile_context>

<pallas_src>
import jax
import jax.numpy as jnp
from jax.experimental import pallas as pl
from jax.experimental.pallas import tpu as pltpu

_KERNELS = {
    'linear': [1 / 8, 3 / 8, 3 / 8, 1 / 8],
    'cubic': [-0.01171875, -0.03515625, 0.11328125, 0.43359375, 0.43359375,
              0.11328125, -0.03515625, -0.01171875],
    'lanczos3': [0.003689131001010537, 0.015056144446134567,
                 -0.03399861603975296, -0.066637322306633,
                 0.13550527393817902, 0.44638532400131226,
                 0.44638532400131226, 0.13550527393817902,
                 -0.066637322306633, -0.03399861603975296,
                 0.015056144446134567, 0.003689131001010537],
}


# ----------------------------------------------------------------------------
# Host-side construction of the folded downsample matrices.
# ----------------------------------------------------------------------------
def _pad_index(j, size, pad_mode):
    """Map a (possibly out-of-range) padded index to (in-range index, weight)."""
    if 0 <= j < size:
        return j, 1.0
    if pad_mode == 'reflect':
        j = -j if j < 0 else 2 * (size - 1) - j
        return j, 1.0
    if pad_mode == 'replicate':
        return min(max(j, 0), size - 1), 1.0
    if pad_mode == 'circular':
        return j % size, 1.0
    if pad_mode == 'constant':
        return 0, 0.0
    raise NotImplementedError(f"pad_mode={pad_mode!r}")


def _downsample_matrix(size, kernel_1d, pad, pad_mode):
    """(n_out, size) matrix folding the 1-D taps + stride-2 + padding."""
    taps = len(kernel_1d)
    n_out = (size + 2 * pad - taps) // 2 + 1
    rows = []
    for o in range(n_out):
        row = [0.0] * size
        for t, kv in enumerate(kernel_1d):
            j, scale = _pad_index(2 * o + t - pad, size, pad_mode)
            row[j] += kv * scale
        rows.append(row)
    return jnp.asarray(rows, jnp.float32)


# ----------------------------------------------------------------------------
# VMEM budgeting (generation-aware, lane/sublane-padded accounting).
# ----------------------------------------------------------------------------
def _round_up(x, m):
    return (x + m - 1) // m * m


def _vmem_caps():
    """(physical_vmem_bytes, usable_tile_budget_bytes)."""
    cap = 64 << 20                       # conservative default (v7x per-TC)
    try:
        info = pltpu.get_tpu_info()
        cap = int(getattr(info, 'vmem_capacity_bytes', cap) or cap)
    except Exception:
        pass
    return cap, int(cap * 0.6)           # leave headroom for compiler scratch


def _pick_fused_tile(b, hw, howo, x_itemsize, c_itemsize, budget):
    """Planes per grid step for the fused path (block (P, H*W))."""
    # Resident M^T block, conservatively counted double-buffered.
    resident = 2 * _round_up(hw, 8) * _round_up(howo, 128) * c_itemsize
    legal = [p for p in range(1, b + 1)
             if b % p == 0 and (p % 8 == 0 or p == b)]   # sublane rule

    def need(p):
        inb = _round_up(p, 8) * _round_up(hw, 128) * x_itemsize
        outb = _round_up(p, 8) * _round_up(howo, 128) * x_itemsize
        return 2 * (inb + outb) + resident               # double-buffered I/O

    fitting = [p for p in legal if need(p) <= budget]
    if not fitting:
        return min(legal)
    pref = [p for p in fitting if b // p >= 4]           # keep pipeline fed
    return max(pref) if pref else max(fitting)


def _pick_separable_tile(b, h, w, hout, wout, x_itemsize, c_itemsize, budget,
                         dhbig_cap=8 << 20):
    """Planes per grid step for the separable fallback (block (tb, H, W))."""
    legal = [t for t in range(1, b + 1) if b % t == 0]

    def need(t):
        inb = t * _round_up(h, 8) * _round_up(w, 128) * x_itemsize
        outb = t * _round_up(hout, 8) * _round_up(wout, 128) * x_itemsize
        dwt_b = 2 * _round_up(w, 8) * _round_up(wout, 128) * c_itemsize
        dhb_b = 2 * _round_up(t * hout, 8) * _round_up(t * h, 128) * c_itemsize
        return 2 * (inb + outb) + dwt_b + dhb_b

    fitting = [t for t in legal
               if need(t) <= budget
               and t * t * hout * h * c_itemsize <= dhbig_cap]
    if not fitting:
        return 1
    pref = [t for t in fitting if b // t >= 4]
    return max(pref) if pref else max(fitting)


# ----------------------------------------------------------------------------
# Kernels.
# ----------------------------------------------------------------------------
def _fused_kernel(x_ref, mt_ref, o_ref):
    # x_ref : (P, H*W)       P planes packed along the lane axis
    # mt_ref: (H*W, Ho*Wo)   kron(D_h, D_w)^T, VMEM resident
    # o_ref : (P, Ho*Wo)
    x = x_ref[...].astype(mt_ref.dtype)
    o_ref[...] = jnp.dot(x, mt_ref[...],
                         preferred_element_type=jnp.float32).astype(o_ref.dtype)


def _make_separable_kernel(tb, h, w, hout, wout):
    def kernel(x_ref, dwt_ref, dhb_ref, o_ref):
        # x_ref  : (tb, H, W)
        # dwt_ref: (W, Wout)            D_w^T, resident
        # dhb_ref: (tb*Hout, tb*H)      kron(I_tb, D_h), resident
        # o_ref  : (tb, Hout, Wout)
        x2 = x_ref[...].reshape(tb * h, w).astype(dwt_ref.dtype)
        z = jnp.dot(x2, dwt_ref[...],
                    preferred_element_type=jnp.float32)        # (tb*H, Wout)
        z = z.astype(dhb_ref.dtype)
        o2 = jnp.dot(dhb_ref[...], z,
                     preferred_element_type=jnp.float32)       # (tb*Hout, Wout)
        o_ref[...] = o2.reshape(tb, hout, wout).astype(o_ref.dtype)
    return kernel


# ----------------------------------------------------------------------------
# Public wrapper.
# ----------------------------------------------------------------------------
def downsample2d(x_nchw, kernel='linear', pad_mode='reflect',
                 max_fused_matrix_bytes=2 << 20):
    """Pallas TPU equivalent of k_diffusion Downsample2d.forward (NCHW in/out)."""
    k1d = _KERNELS[kernel]
    pad = len(k1d) // 2 - 1
    n, c, h, w = x_nchw.shape
    dh = _downsample_matrix(h, k1d, pad, pad_mode)             # (Hout, H)
    dw = _downsample_matrix(w, k1d, pad, pad_mode)             # (Wout, W)
    hout, wout = dh.shape[0], dw.shape[0]
    b = n * c

    # Keep bf16 activations on the bf16 MXU path; everything else computes f32.
    if x_nchw.dtype == jnp.bfloat16:
        compute_dtype = jnp.bfloat16
    else:
        compute_dtype = jnp.float32
    c_itemsize = jnp.dtype(compute_dtype).itemsize
    x_itemsize = jnp.dtype(x_nchw.dtype).itemsize

    cap, budget = _vmem_caps()
    cparams = pltpu.CompilerParams(
        dimension_semantics=("parallel",),
        vmem_limit_bytes=int(min(cap, budget + (8 << 20))))

    hw, howo = h * w, hout * wout
    fused_m_bytes = hw * howo * c_itemsize

    if fused_m_bytes <= max_fused_matrix_bytes:
        # ---- fused path: one lane-dense matmul per tile of planes ----
        mt = jnp.kron(dh, dw).T.astype(compute_dtype)          # (H*W, Ho*Wo)
        p = _pick_fused_tile(b, hw, howo, x_itemsize, c_itemsize, budget)
        x2 = x_nchw.reshape(b, hw)                             # free reshape
        out2 = pl.pallas_call(
            _fused_kernel,
            out_shape=jax.ShapeDtypeStruct((b, howo), x_nchw.dtype),
            grid=(b // p,),
            in_specs=[
                pl.BlockSpec((p, hw), lambda i: (i, 0)),       # plane tile
                pl.BlockSpec((hw, howo), lambda i: (0, 0)),    # M^T resident
            ],
            out_specs=pl.BlockSpec((p, howo), lambda i: (i, 0)),
            compiler_params=cparams,
        )(x2, mt)
        return out2.reshape(n, c, hout, wout)

    # ---- separable fallback: horizontal matmul + block-diag vertical matmul ----
    tb = _pick_separable_tile(b, h, w, hout, wout, x_itemsize, c_itemsize, budget)
    dwt = dw.T.astype(compute_dtype)                           # (W, Wout)
    dhb = jnp.kron(jnp.eye(tb, dtype=jnp.float32), dh).astype(compute_dtype)
    x3 = x_nchw.reshape(b, h, w)
    out3 = pl.pallas_call(
        _make_separable_kernel(tb, h, w, hout, wout),
        out_shape=jax.ShapeDtypeStruct((b, hout, wout), x_nchw.dtype),
        grid=(b // tb,),
        in_specs=[
            pl.BlockSpec((tb, h, w), lambda i: (i, 0, 0)),
            pl.BlockSpec((w, wout), lambda i: (0, 0)),
            pl.BlockSpec((tb * hout, tb * h), lambda i: (0, 0)),
        ],
        out_specs=pl.BlockSpec((tb, hout, wout), lambda i: (i, 0, 0)),
        compiler_params=cparams,
    )(x3, dwt, dhb)
    return out3.reshape(n, c, hout, wout)


# ----------------------------------------------------------------------------
# Pure-JAX reference mirroring the PyTorch forward exactly.
# ----------------------------------------------------------------------------
def _reference(x_nchw, kernel='linear', pad_mode='reflect'):
    k1d = jnp.asarray(_KERNELS[kernel], jnp.float32)
    k2d = jnp.outer(k1d, k1d)
    pad = k1d.shape[0] // 2 - 1
    n, c, h, w = x_nchw.shape
    jmode = {'reflect': 'reflect', 'replicate': 'edge',
             'circular': 'wrap', 'constant': 'constant'}[pad_mode]
    xp = jnp.pad(x_nchw, ((0, 0), (0, 0), (pad, pad), (pad, pad)), mode=jmode)
    wgt = jnp.zeros((c, 1) + k2d.shape, x_nchw.dtype).at[:, 0].set(k2d)
    return jax.lax.conv_general_dilated(
        xp, wgt, window_strides=(2, 2), padding='VALID',
        dimension_numbers=('NCHW', 'OIHW', 'NCHW'), feature_group_count=c)


if __name__ == "__main__":
    N, C, H, W = 2, 4, 16, 16
    x = jax.random.normal(jax.random.PRNGKey(0), (N, C, H, W), jnp.float32)

    out = jax.block_until_ready(downsample2d(x, kernel='linear',
                                             pad_mode='reflect'))
    assert out.shape == (N, C, H // 2, W // 2), out.shape
    assert bool(jnp.all(jnp.isfinite(out)))

    ref = jax.block_until_ready(_reference(x, kernel='linear',
                                           pad_mode='reflect'))
    assert bool(jnp.allclose(out, ref, rtol=1e-3, atol=1e-3)), (
        float(jnp.max(jnp.abs(out - ref))))

    # Also exercise the separable fallback path (used for large images).
    out_sep = jax.block_until_ready(
        downsample2d(x, kernel='linear', pad_mode='reflect',
                     max_fused_matrix_bytes=0))
    assert bool(jnp.allclose(out_sep, ref, rtol=1e-3, atol=1e-3)), (
        float(jnp.max(jnp.abs(out_sep - ref))))

    print("KERNEL_OK")
</pallas_src>

<mosaic_0001>
module attributes {stable_mosaic.version = 11 : i64} {
  func.func @_fused_kernel(%arg0: i32, %arg1: memref<8x256xf32, #tpu.memory_space<vmem>>, %arg2: memref<256x64xf32, #tpu.memory_space<vmem>>, %arg3: memref<8x64xf32, #tpu.memory_space<vmem>>) attributes {dimension_semantics = [#tpu.dimension_semantics<parallel>], iteration_bounds = array<i64: 1>, scalar_prefetch = 0 : i64, scratch_operands = 0 : i64, tpu.core_type = #tpu.core_type<tc>, window_params = [{transform_indices = @transform_0, window_bounds = array<i64: 8, 256>}, {pipeline_mode = #tpu.pipeline_mode<synchronous>, transform_indices = @transform_1, window_bounds = array<i64: 256, 64>}, {transform_indices = @transform_2, window_bounds = array<i64: 8, 64>}]} {
    %c0 = arith.constant 0 : index
    %c0_0 = arith.constant 0 : index
    %0 = vector.load %arg1[%c0, %c0_0] : memref<8x256xf32, #tpu.memory_space<vmem>>, vector<8x256xf32>
    %c0_1 = arith.constant 0 : index
    %c0_2 = arith.constant 0 : index
    %1 = vector.load %arg2[%c0_1, %c0_2] : memref<256x64xf32, #tpu.memory_space<vmem>>, vector<256x64xf32>
    %cst = arith.constant dense<0.000000e+00> : vector<8x64xf32>
    %2 = tpu.matmul %0, %1, %cst {dimension_numbers = #tpu.dot_dimension_numbers<[1], [0], [0], [1], [0, 0, 1, 1], [], []>} : vector<8x256xf32>, vector<256x64xf32>, vector<8x64xf32> -> vector<8x64xf32>
    %c0_3 = arith.constant 0 : index
    %c0_4 = arith.constant 0 : index
    %3 = vector.load %arg3[%c0_3, %c0_4] : memref<8x64xf32, #tpu.memory_space<vmem>>, vector<8x64xf32>
    tpu.vector_store %arg3[%c0_3, %c0_4], %2 {strides = array<i32>} : memref<8x64xf32, #tpu.memory_space<vmem>>, vector<8x64xf32>,
    return
  }
  func.func @transform_0(%arg0: i32) -> (i32, i32) {
    %c0_i32 = arith.constant 0 : i32
    %c0_i32_0 = arith.constant 0 : i32
    return %arg0, %c0_i32 : i32, i32
  }
  func.func @transform_1(%arg0: i32) -> (i32, i32) {
    %c0_i32 = arith.constant 0 : i32
    %c0_i32_0 = arith.constant 0 : i32
    %c0_i32_1 = arith.constant 0 : i32
    return %c0_i32, %c0_i32_0 : i32, i32
  }
  func.func @transform_2(%arg0: i32) -> (i32, i32) {
    %c0_i32 = arith.constant 0 : i32
    %c0_i32_0 = arith.constant 0 : i32
    return %arg0, %c0_i32 : i32, i32
  }
}

</mosaic_0001>

<llo_original>
// kernel: tpu_custom_call.1
$region0: #{tpu_custom_call.1}
  #allocation0 [shape = 'u32[]', space=smem, size = 0x4, offset = 0x4, fixed_abs, tag = 'smem constant byte address 0x4 - core index']
  #allocation1 [shape = 'u32[72,128]{1,0:T(1,128)}', space=vmem, size = 0x9000, scoped, tag = 'internal scratch']
  %s0 = inlined_call_operand.vmem [shape: f32[8,256], index: 0, kind: input, shape index: {}]
  %s1 = inlined_call_operand.vmem [shape: f32[256,64], index: 1, kind: input, shape index: {}]
  %s2 = inlined_call_operand.hbm [shape: f32[8,64], index: 2, kind: output, shape index: {}]
  %s3 = sld [smem:[#allocation0]]
  $region18: #{tpu_custom_call.1} parent=0
    _
  %s5 = ssub.s32 1, %s3
  %s6 = scalar_select 0, %s5, %s3
  $region1: #{tpu_custom_call.1} parent=0
    #allocation2 [shape = 'u8[4096]{0}', space=vmem, size = 0x1000, scoped, tag = 'output window, operand 0, single buffered']
    #allocation3 [shape = 's32[1]{0}', space=sflag, size = 0x4, scoped, tag = 'scoped memory for tpu_custom_call.1']
    %7 = vsyncpa [#allocation3], 0
    // Predicated region
    $region2: #{tpu_custom_call.1} parent=1 // pred_check
      _
    $region3: #{tpu_custom_call.1} parent=1 // pred_check_branch
      %9 = sbr.rel (0) target = $region5
    $region4: #{tpu_custom_call.1} parent=1 // pred_region
      _
    $region5: #{tpu_custom_call.1} parent=1 // pred_fallthru
      _
    // Predicated region
    $region6: #{tpu_custom_call.1} parent=1 // pred_check
      _
    $region7: #{tpu_custom_call.1} parent=1 // pred_check_branch
      %11 = sbr.rel (0) target = $region9
    $region8: #{tpu_custom_call.1} parent=1 // pred_region
      _
    $region9: #{tpu_custom_call.1} parent=1 // pred_fallthru
      _
    %v12 = vld [vmem:[%s0] sm:$0xff]
    %v13 = vld [vmem:[%s0 + $0x8] sm:$0xff]
    %v14 = vld [vmem:[%s1] sm:$0xff]
    %v15 = vld [vmem:[%s1 + $0x8] sm:$0xff]
    %v16 = vld [vmem:[%s1 + $0x10] sm:$0xff]
    %v17 = vld [vmem:[%s1 + $0x18] sm:$0xff]
    %v18 = vld [vmem:[%s1 + $0x20] sm:$0xff]
    %v19 = vld [vmem:[%s1 + $0x28] sm:$0xff]
    %v20 = vld [vmem:[%s1 + $0x30] sm:$0xff]
    %v21 = vld [vmem:[%s1 + $0x38] sm:$0xff]
    %v22 = vld [vmem:[%s1 + $0x40] sm:$0xff]
    %v23 = vld [vmem:[%s1 + $0x48] sm:$0xff]
    %v24 = vld [vmem:[%s1 + $0x50] sm:$0xff]
    %v25 = vld [vmem:[%s1 + $0x58] sm:$0xff]
    %v26 = vld [vmem:[%s1 + $0x60] sm:$0xff]
    %v27 = vld [vmem:[%s1 + $0x68] sm:$0xff]
    %v28 = vld [vmem:[%s1 + $0x70] sm:$0xff]
    %v29 = vld [vmem:[%s1 + $0x78] sm:$0xff]
    %v30 = vld [vmem:[%s1 + $0x80] sm:$0xff]
    %v31 = vld [vmem:[%s1 + $0x88] sm:$0xff]
    %v32 = vld [vmem:[%s1 + $0x90] sm:$0xff]
    %v33 = vld [vmem:[%s1 + $0x98] sm:$0xff]
    %v34 = vld [vmem:[%s1 + $0xa0] sm:$0xff]
    %v35 = vld [vmem:[%s1 + $0xa8] sm:$0xff]
    %v36 = vld [vmem:[%s1 + $0xb0] sm:$0xff]
    %v37 = vld [vmem:[%s1 + $0xb8] sm:$0xff]
    %v38 = vld [vmem:[%s1 + $0xc0] sm:$0xff]
    %v39 = vld [vmem:[%s1 + $0xc8] sm:$0xff]
    %v40 = vld [vmem:[%s1 + $0xd0] sm:$0xff]
    %v41 = vld [vmem:[%s1 + $0xd8] sm:$0xff]
    %v42 = vld [vmem:[%s1 + $0xe0] sm:$0xff]
    %v43 = vld [vmem:[%s1 + $0xe8] sm:$0xff]
    %v44 = vld [vmem:[%s1 + $0xf0] sm:$0xff]
    %v45 = vld [vmem:[%s1 + $0xf8] sm:$0xff]
    %46 = vmatpush.msra.mxu0 %v29
    %47 = vmatpush.msra.mxu0 %v28
    %48 = vmatpush.msra.mxu0 %v27
    %49 = vmatpush.msra.mxu0 %v26
    %50 = vmatpush.msra.mxu0 %v25
    %51 = vmatpush.msra.mxu0 %v24
    %52 = vmatpush.msra.mxu0 %v23
    %53 = vmatpush.msra.mxu0 %v22
    %54 = vmatpush.msra.mxu0 %v21
    %55 = vmatpush.msra.mxu0 %v20
    %56 = vmatpush.msra.mxu0 %v19
    %57 = vmatpush.msra.mxu0 %v18
    %58 = vmatpush.msra.mxu0 %v17
    %59 = vmatpush.msra.mxu0 %v16
    %60 = vmatpush.msra.mxu0 %v15
    %61 = vmatpush.msra.mxu0 %v14
    %62 = vmatmul.f32.gmra.mxu0 %v12
    %v63 = vpop.f32.mrf.mxu0
    %v64 = vadd.f32 0.0, %v63
    %65 = vdwg.mxu0
    %66 = vmatpush.msra.mxu0 %v45
    %67 = vmatpush.msra.mxu0 %v44
    %68 = vmatpush.msra.mxu0 %v43
    %69 = vmatpush.msra.mxu0 %v42
    %70 = vmatpush.msra.mxu0 %v41
    %71 = vmatpush.msra.mxu0 %v40
    %72 = vmatpush.msra.mxu0 %v39
    %73 = vmatpush.msra.mxu0 %v38
    %74 = vmatpush.msra.mxu0 %v37
    %75 = vmatpush.msra.mxu0 %v36
    %76 = vmatpush.msra.mxu0 %v35
    %77 = vmatpush.msra.mxu0 %v34
    %78 = vmatpush.msra.mxu0 %v33
    %79 = vmatpush.msra.mxu0 %v32
    %80 = vmatpush.msra.mxu0 %v31
    %81 = vmatpush.msra.mxu0 %v30
    %82 = vmatmul.f32.gmra.mxu0 %v13
    %v83 = vpop.f32.mrf.mxu0
    %v84 = vadd.f32 %v64, %v83
    %85 = vdwg.mxu0
    %vm86 = vcmask 523264
    %87 = vst.msk [vmem:[#allocation2] sm:$0xff] %vm86, %v84
    // Predicated region
    $region10: #{tpu_custom_call.1} parent=1 // pred_check
      _
    $region11: #{tpu_custom_call.1} parent=1 // pred_check_branch
      %89 = sbr.rel (0) target = $region13
    $region12: #{tpu_custom_call.1} parent=1 // pred_region
      %91 = vsyncadd [#allocation3], 0
      %s93 = sshll.u32 [#allocation2], 4
      %s94 = int_to_ptr.vmem [resolvable:$true] %s93
      %s95 = sshll.u32 %s2, 4
      %s96 = int_to_ptr.hbm [resolvable:$true] %s95
      %98 = dma.vmem_to_hbm [thread:$0]  %s94, 128, %s96, [#allocation3]
    $region13: #{tpu_custom_call.1} parent=1 // pred_fallthru
      _
    // Predicated region
    $region14: #{tpu_custom_call.1} parent=1 // pred_check
      _
    $region15: #{tpu_custom_call.1} parent=1 // pred_check_branch
      %100 = sbr.rel (0) target = $region17
    $region16: #{tpu_custom_call.1} parent=1 // pred_region
      %102 = dma.done [#allocation3], 128
    $region17: #{tpu_custom_call.1} parent=1 // pred_fallthru
      _
    %103 = vsyncpa [#allocation3], 1

</llo_original>
